<compile_context>
chip_gen: v5e
topology: v5e:2x2
jax: 0.10.0
libtpu: 0.0.40
codegen_flags: <defaults>
</compile_context>

<pallas_src>
import jax
import jax.numpy as jnp
import numpy as np
from jax.experimental import pallas as pl
from jax.experimental.pallas import tpu as pltpu


def _round_up(x, m):
    return ((x + m - 1) // m) * m


def _embedding_kernel(x_ref, m_ref, w1e_ref, b1_ref, w2bd_ref, b2_ref,
                      mexp_ref, emb_ref, out_ref):
    """Everything stays lane-dense: hidden as (Bt, F*Hp), output as (Bt, F*D)."""
    x = x_ref[...]                                   # (Bt, F)  f32
    m0 = (m_ref[...] == 0).astype(jnp.float32)       # (Bt, F)  1.0 where masked

    # Stage 1: all F per-feature Linear(1, H) layers as ONE MXU matmul.
    hidden = jnp.dot(x, w1e_ref[...], preferred_element_type=jnp.float32) + b1_ref[...]
    hidden = jnp.maximum(hidden, 0.0)                # (Bt, F*Hp), padded cols stay exactly 0

    # Stage 2: all F per-feature Linear(H, D) layers as ONE block-diagonal matmul that
    # emits the lane-dense (Bt, F*D) output slab directly.
    y = jnp.dot(hidden, w2bd_ref[...], preferred_element_type=jnp.float32) + b2_ref[...]

    # Expand the (Bt, F) mask indicator across each feature's D lanes with a 0/1 matmul
    # (exact, avoids in-kernel reshapes), then select embedding rows where x_mask == 0.
    use_emb = jnp.dot(m0, mexp_ref[...], preferred_element_type=jnp.float32) > 0.5
    out_ref[...] = jnp.where(use_emb, emb_ref[...], y).astype(out_ref.dtype)


def embedding_layer_forward(x, x_mask, w1, b1, w2, b2, emb_table, *, b_tile=512):
    """x: (B, F) f32, x_mask: (B, F) i32 in {0,1}, w1/b1: (F, H), w2: (F, H, D),
    b2: (F, D), emb_table: (2F, D).  Returns (B, F, D) f32."""
    B, F = x.shape
    _, H = w1.shape
    D = b2.shape[1]
    Hp = _round_up(H, 128)          # aligned MXU K; zero numerical cost (padding is exact 0)
    FD = F * D
    FHp = F * Hp

    # ---- one-time lane-dense parameter packing (vectorized, wrapper-side) ----
    eye = jnp.eye(F, dtype=jnp.float32)
    w1p = jnp.pad(w1.astype(jnp.float32), ((0, 0), (0, Hp - H)))          # (F, Hp)
    b1p = jnp.pad(b1.astype(jnp.float32), ((0, 0), (0, Hp - H)))          # (F, Hp)
    w2p = jnp.pad(w2.astype(jnp.float32), ((0, 0), (0, Hp - H), (0, 0)))  # (F, Hp, D)

    w1e = (eye[:, :, None] * w1p[None, :, :]).reshape(F, FHp)             # stage-1 blocks
    b1f = b1p.reshape(1, FHp)
    w2bd = (eye[:, None, :, None] * w2p[:, :, None, :]).reshape(FHp, FD)  # block-diagonal
    b2f = b2.astype(jnp.float32).reshape(1, FD)
    mexp = jnp.repeat(eye, D, axis=1)                                     # (F, F*D) 0/1
    # Only embedding rows 2*f are ever read on the x_mask == 0 path (x_mask in {0,1}).
    embf = emb_table[::2].astype(jnp.float32).reshape(1, FD)

    # ---- batch tiling: sublane-aligned tiles, pad B so every block is full ----
    bt = _round_up(min(b_tile, _round_up(B, 8)), 8)
    Bp = _round_up(B, bt)
    if Bp != B:
        x = jnp.pad(x, ((0, Bp - B), (0, 0)))
        x_mask = jnp.pad(x_mask, ((0, Bp - B), (0, 0)), constant_values=1)

    batch_spec = lambda shape: pl.BlockSpec(shape, lambda i: (i, 0))
    const_spec = lambda shape: pl.BlockSpec(shape, lambda i: (0, 0))  # stays VMEM-resident

    out = pl.pallas_call(
        _embedding_kernel,
        out_shape=jax.ShapeDtypeStruct((Bp, FD), jnp.float32),
        grid=(Bp // bt,),
        in_specs=[
            batch_spec((bt, F)),        # x
            batch_spec((bt, F)),        # x_mask
            const_spec((F, FHp)),       # w1e
            const_spec((1, FHp)),       # b1f
            const_spec((FHp, FD)),      # w2bd
            const_spec((1, FD)),        # b2f
            const_spec((F, FD)),        # mexp
            const_spec((1, FD)),        # embf
        ],
        out_specs=batch_spec((bt, FD)),   # lane-dense output slab
        compiler_params=pltpu.CompilerParams(
            dimension_semantics=("parallel",),   # shard batch tiles across TCs on v7x
        ),
    )(x, x_mask, w1e, b1f, w2bd, b2f, mexp, embf)

    return out[:B].reshape(B, F, D)


if __name__ == "__main__":
    # Small shapes implied by the module: num_features=4, dim=32, MLP hidden=100.
    B, F, H, D = 8, 4, 100, 32

    key = jax.random.PRNGKey(0)
    ks = jax.random.split(key, 7)
    x = jax.random.normal(ks[0], (B, F), dtype=jnp.float32)
    x_mask = jax.random.bernoulli(ks[1], 0.5, (B, F)).astype(jnp.int32)

    # Deterministic synthetic parameters (shapes from EmbeddingLayer.__init__):
    #   MLPs[i] = Linear(1,100) -> ReLU -> Linear(100,dim); embedding_mask = Embedding(2F, dim)
    w1 = jax.random.normal(ks[2], (F, H), dtype=jnp.float32) * 0.1     # Linear(1,H).weight[:, 0]
    b1 = jax.random.normal(ks[3], (F, H), dtype=jnp.float32) * 0.1     # Linear(1,H).bias
    w2 = jax.random.normal(ks[4], (F, H, D), dtype=jnp.float32) * 0.1  # Linear(H,D).weight.T
    b2 = jax.random.normal(ks[5], (F, D), dtype=jnp.float32) * 0.1     # Linear(H,D).bias
    emb_table = jax.random.normal(ks[6], (2 * F, D), dtype=jnp.float32)

    out = embedding_layer_forward(x, x_mask, w1, b1, w2, b2, emb_table)
    out = jax.block_until_ready(out)

    # Pure-JAX reference (original per-feature formulation).
    hidden = jnp.maximum(x[:, :, None] * w1[None] + b1[None], 0.0)
    ref = jnp.einsum('bfh,fhd->bfd', hidden, w2) + b2[None]
    idx = x_mask + (2 * jnp.arange(F, dtype=jnp.int32))[None, :]
    ref = jnp.where((x_mask == 0)[:, :, None], emb_table[idx], ref)

    assert out.shape == (B, F, D) and out.dtype == jnp.float32
    assert np.allclose(np.asarray(out), np.asarray(ref), atol=1e-4, rtol=1e-3)

    print("KERNEL_OK")
</pallas_src>

<mosaic_0001>
module attributes {stable_mosaic.version = 11 : i64} {
  func.func @_embedding_kernel(%arg0: i32, %arg1: memref<8x4xf32, #tpu.memory_space<vmem>>, %arg2: memref<8x4xi32, #tpu.memory_space<vmem>>, %arg3: memref<4x512xf32, #tpu.memory_space<vmem>>, %arg4: memref<1x512xf32, #tpu.memory_space<vmem>>, %arg5: memref<512x128xf32, #tpu.memory_space<vmem>>, %arg6: memref<1x128xf32, #tpu.memory_space<vmem>>, %arg7: memref<4x128xf32, #tpu.memory_space<vmem>>, %arg8: memref<1x128xf32, #tpu.memory_space<vmem>>, %arg9: memref<8x128xf32, #tpu.memory_space<vmem>>) attributes {dimension_semantics = [#tpu.dimension_semantics<parallel>], iteration_bounds = array<i64: 1>, scalar_prefetch = 0 : i64, scratch_operands = 0 : i64, tpu.core_type = #tpu.core_type<tc>, window_params = [{transform_indices = @transform_0, window_bounds = array<i64: 8, 4>}, {transform_indices = @transform_1, window_bounds = array<i64: 8, 4>}, {pipeline_mode = #tpu.pipeline_mode<synchronous>, transform_indices = @transform_2, window_bounds = array<i64: 4, 512>}, {pipeline_mode = #tpu.pipeline_mode<synchronous>, transform_indices = @transform_3, window_bounds = array<i64: 1, 512>}, {pipeline_mode = #tpu.pipeline_mode<synchronous>, transform_indices = @transform_4, window_bounds = array<i64: 512, 128>}, {pipeline_mode = #tpu.pipeline_mode<synchronous>, transform_indices = @transform_5, window_bounds = array<i64: 1, 128>}, {pipeline_mode = #tpu.pipeline_mode<synchronous>, transform_indices = @transform_6, window_bounds = array<i64: 4, 128>}, {pipeline_mode = #tpu.pipeline_mode<synchronous>, transform_indices = @transform_7, window_bounds = array<i64: 1, 128>}, {transform_indices = @transform_8, window_bounds = array<i64: 8, 128>}]} {
    %c0 = arith.constant 0 : index
    %c0_0 = arith.constant 0 : index
    %0 = vector.load %arg1[%c0, %c0_0] : memref<8x4xf32, #tpu.memory_space<vmem>>, vector<8x4xf32>
    %c0_1 = arith.constant 0 : index
    %c0_2 = arith.constant 0 : index
    %1 = vector.load %arg2[%c0_1, %c0_2] : memref<8x4xi32, #tpu.memory_space<vmem>>, vector<8x4xi32>
    %c0_i32 = arith.constant 0 : i32
    %2 = vector.broadcast %c0_i32 : i32 to vector<8x4xi32>
    %3 = arith.cmpi eq, %1, %2 : vector<8x4xi32>
    %4 = arith.extui %3 : vector<8x4xi1> to vector<8x4xi32>
    %5 = arith.sitofp %4 : vector<8x4xi32> to vector<8x4xf32>
    %c0_3 = arith.constant 0 : index
    %c0_4 = arith.constant 0 : index
    %6 = vector.load %arg3[%c0_3, %c0_4] : memref<4x512xf32, #tpu.memory_space<vmem>>, vector<4x512xf32>
    %cst = arith.constant dense<0.000000e+00> : vector<8x512xf32>
    %7 = tpu.matmul %0, %6, %cst {dimension_numbers = #tpu.dot_dimension_numbers<[1], [0], [0], [1], [0, 0, 1, 1], [], []>} : vector<8x4xf32>, vector<4x512xf32>, vector<8x512xf32> -> vector<8x512xf32>
    %c0_5 = arith.constant 0 : index
    %c0_6 = arith.constant 0 : index
    %8 = vector.load %arg4[%c0_5, %c0_6] : memref<1x512xf32, #tpu.memory_space<vmem>>, vector<1x512xf32>
    %9 = vector.broadcast %8 : vector<1x512xf32> to vector<8x512xf32>
    %10 = arith.addf %7, %9 : vector<8x512xf32>
    %cst_7 = arith.constant 0.000000e+00 : f32
    %11 = vector.broadcast %cst_7 : f32 to vector<8x512xf32>
    %12 = arith.maximumf %10, %11 : vector<8x512xf32>
    %c0_8 = arith.constant 0 : index
    %c0_9 = arith.constant 0 : index
    %13 = vector.load %arg5[%c0_8, %c0_9] : memref<512x128xf32, #tpu.memory_space<vmem>>, vector<512x128xf32>
    %cst_10 = arith.constant dense<0.000000e+00> : vector<8x128xf32>
    %14 = tpu.matmul %12, %13, %cst_10 {dimension_numbers = #tpu.dot_dimension_numbers<[1], [0], [0], [1], [0, 0, 1, 1], [], []>} : vector<8x512xf32>, vector<512x128xf32>, vector<8x128xf32> -> vector<8x128xf32>
    %c0_11 = arith.constant 0 : index
    %c0_12 = arith.constant 0 : index
    %15 = vector.load %arg6[%c0_11, %c0_12] : memref<1x128xf32, #tpu.memory_space<vmem>>, vector<1x128xf32>
    %16 = vector.broadcast %15 : vector<1x128xf32> to vector<8x128xf32>
    %17 = arith.addf %14, %16 : vector<8x128xf32>
    %c0_13 = arith.constant 0 : index
    %c0_14 = arith.constant 0 : index
    %18 = vector.load %arg7[%c0_13, %c0_14] : memref<4x128xf32, #tpu.memory_space<vmem>>, vector<4x128xf32>
    %cst_15 = arith.constant dense<0.000000e+00> : vector<8x128xf32>
    %19 = tpu.matmul %5, %18, %cst_15 {dimension_numbers = #tpu.dot_dimension_numbers<[1], [0], [0], [1], [0, 0, 1, 1], [], []>} : vector<8x4xf32>, vector<4x128xf32>, vector<8x128xf32> -> vector<8x128xf32>
    %cst_16 = arith.constant 5.000000e-01 : f32
    %20 = vector.broadcast %cst_16 : f32 to vector<8x128xf32>
    %21 = arith.cmpf ogt, %19, %20 : vector<8x128xf32>
    %c0_17 = arith.constant 0 : index
    %c0_18 = arith.constant 0 : index
    %22 = vector.load %arg8[%c0_17, %c0_18] : memref<1x128xf32, #tpu.memory_space<vmem>>, vector<1x128xf32>
    %23 = vector.shape_cast %22 : vector<1x128xf32> to vector<1x128xf32>
    %24 = vector.broadcast %23 : vector<1x128xf32> to vector<8x128xf32>
    %25 = arith.select %21, %24, %17 : vector<8x128xi1>, vector<8x128xf32>
    %c0_19 = arith.constant 0 : index
    %c0_20 = arith.constant 0 : index
    %26 = vector.load %arg9[%c0_19, %c0_20] : memref<8x128xf32, #tpu.memory_space<vmem>>, vector<8x128xf32>
    tpu.vector_store %arg9[%c0_19, %c0_20], %25 {strides = array<i32>} : memref<8x128xf32, #tpu.memory_space<vmem>>, vector<8x128xf32>,
    return
  }
  func.func @transform_0(%arg0: i32) -> (i32, i32) {
    %c0_i32 = arith.constant 0 : i32
    %c0_i32_0 = arith.constant 0 : i32
    return %arg0, %c0_i32 : i32, i32
  }
  func.func @transform_1(%arg0: i32) -> (i32, i32) {
    %c0_i32 = arith.constant 0 : i32
    %c0_i32_0 = arith.constant 0 : i32
    return %arg0, %c0_i32 : i32, i32
  }
  func.func @transform_2(%arg0: i32) -> (i32, i32) {
    %c0_i32 = arith.constant 0 : i32
    %c0_i32_0 = arith.constant 0 : i32
    %c0_i32_1 = arith.constant 0 : i32
    return %c0_i32, %c0_i32_0 : i32, i32
  }
  func.func @transform_3(%arg0: i32) -> (i32, i32) {
    %c0_i32 = arith.constant 0 : i32
    %c0_i32_0 = arith.constant 0 : i32
    %c0_i32_1 = arith.constant 0 : i32
    return %c0_i32, %c0_i32_0 : i32, i32
  }
  func.func @transform_4(%arg0: i32) -> (i32, i32) {
    %c0_i32 = arith.constant 0 : i32
    %c0_i32_0 = arith.constant 0 : i32
    %c0_i32_1 = arith.constant 0 : i32
    return %c0_i32, %c0_i32_0 : i32, i32
  }
  func.func @transform_5(%arg0: i32) -> (i32, i32) {
    %c0_i32 = arith.constant 0 : i32
    %c0_i32_0 = arith.constant 0 : i32
    %c0_i32_1 = arith.constant 0 : i32
    return %c0_i32, %c0_i32_0 : i32, i32
  }
  func.func @transform_6(%arg0: i32) -> (i32, i32) {
    %c0_i32 = arith.constant 0 : i32
    %c0_i32_0 = arith.constant 0 : i32
    %c0_i32_1 = arith.constant 0 : i32
    return %c0_i32, %c0_i32_0 : i32, i32
  }
  func.func @transform_7(%arg0: i32) -> (i32, i32) {
    %c0_i32 = arith.constant 0 : i32
    %c0_i32_0 = arith.constant 0 : i32
    %c0_i32_1 = arith.constant 0 : i32
    return %c0_i32, %c0_i32_0 : i32, i32
  }
  func.func @transform_8(%arg0: i32) -> (i32, i32) {
    %c0_i32 = arith.constant 0 : i32
    %c0_i32_0 = arith.constant 0 : i32
    return %arg0, %c0_i32 : i32, i32
  }
}

</mosaic_0001>

<llo_original>
// kernel: tpu_custom_call.1
$region0: #{tpu_custom_call.1}
  #allocation0 [shape = 'u32[]', space=smem, size = 0x4, offset = 0x4, fixed_abs, tag = 'smem constant byte address 0x4 - core index']
  #allocation1 [shape = 'u32[72,128]{1,0:T(1,128)}', space=vmem, size = 0x9000, scoped, tag = 'internal scratch']
  %s0 = inlined_call_operand.vmem [shape: f32[8,4], index: 0, kind: input, shape index: {}]
  %s1 = inlined_call_operand.vmem [shape: s32[8,4], index: 1, kind: input, shape index: {}]
  %s2 = inlined_call_operand.vmem [shape: f32[4,512], index: 2, kind: input, shape index: {}]
  %s3 = inlined_call_operand.vmem [shape: f32[1,512], index: 3, kind: input, shape index: {}]
  %s4 = inlined_call_operand.hbm [shape: f32[512,128], index: 4, kind: input, shape index: {}]
  %s5 = inlined_call_operand.hbm [shape: f32[1,128], index: 5, kind: input, shape index: {}]
  %s6 = inlined_call_operand.vmem [shape: f32[4,128], index: 6, kind: input, shape index: {}]
  %s7 = inlined_call_operand.vmem [shape: f32[1,128], index: 7, kind: input, shape index: {}]
  %s8 = inlined_call_operand.hbm [shape: f32[8,128], index: 8, kind: output, shape index: {}]
  %s9 = sld [smem:[#allocation0]]
  $region50: #{tpu_custom_call.1} parent=0
    _
  %s11 = ssub.s32 1, %s9
  %s12 = scalar_select 0, %s11, %s9
  $region1: #{tpu_custom_call.1} parent=0
    #allocation2 [shape = 'u8[262144]{0}', space=vmem, size = 0x40000, scoped, tag = 'input window, operand 4, single buffered']
    #allocation3 [shape = 's32[1]{0}', space=sflag, size = 0x4, scoped, tag = 'scoped memory for tpu_custom_call.1']
    #allocation4 [shape = 's32[1]{0}', space=sflag, size = 0x4, scoped, tag = 'scoped memory for tpu_custom_call.1']
    #allocation5 [shape = 'u8[512]{0}', space=vmem, size = 0x400, scoped, tag = 'input window, operand 5, single buffered']
    #allocation6 [shape = 's32[1]{0}', space=sflag, size = 0x4, scoped, tag = 'scoped memory for tpu_custom_call.1']
    #allocation7 [shape = 'u8[4096]{0}', space=vmem, size = 0x1000, scoped, tag = 'output window, operand 0, single buffered']
    %13 = vsyncpa [#allocation3], 0
    %14 = vsyncpa [#allocation6], 0
    %15 = vsyncpa [#allocation4], 0
    // Predicated region
    $region2: #{tpu_custom_call.1} parent=1 // pred_check
      _
    $region3: #{tpu_custom_call.1} parent=1 // pred_check_branch
      %17 = sbr.rel (0) target = $region5
    $region4: #{tpu_custom_call.1} parent=1 // pred_region
      _
    $region5: #{tpu_custom_call.1} parent=1 // pred_fallthru
      _
    // Predicated region
    $region6: #{tpu_custom_call.1} parent=1 // pred_check
      _
    $region7: #{tpu_custom_call.1} parent=1 // pred_check_branch
      %19 = sbr.rel (0) target = $region9
    $region8: #{tpu_custom_call.1} parent=1 // pred_region
      _
    $region9: #{tpu_custom_call.1} parent=1 // pred_fallthru
      _
    // Predicated region
    $region10: #{tpu_custom_call.1} parent=1 // pred_check
      _
    $region11: #{tpu_custom_call.1} parent=1 // pred_check_branch
      %21 = sbr.rel (0) target = $region13
    $region12: #{tpu_custom_call.1} parent=1 // pred_region
      _
    $region13: #{tpu_custom_call.1} parent=1 // pred_fallthru
      _
    // Predicated region
    $region14: #{tpu_custom_call.1} parent=1 // pred_check
      _
    $region15: #{tpu_custom_call.1} parent=1 // pred_check_branch
      %23 = sbr.rel (0) target = $region17
    $region16: #{tpu_custom_call.1} parent=1 // pred_region
      _
    $region17: #{tpu_custom_call.1} parent=1 // pred_fallthru
      _
    // Predicated region
    $region18: #{tpu_custom_call.1} parent=1 // pred_check
      _
    $region19: #{tpu_custom_call.1} parent=1 // pred_check_branch
      %25 = sbr.rel (0) target = $region21
    $region20: #{tpu_custom_call.1} parent=1 // pred_region
      %27 = vsyncadd [#allocation3], 0
      %s28 = sshll.u32 %s4, 4
      %s29 = int_to_ptr.hbm [resolvable:$true] %s28
      %s30 = sshll.u32 [#allocation2], 4
      %s31 = int_to_ptr.vmem [resolvable:$true] %s30
      %36 = dma.hbm_to_vmem [thread:$0]  %s29, 8192, %s31, [#allocation3], 128, 128, 8
    $region21: #{tpu_custom_call.1} parent=1 // pred_fallthru
      _
    // Predicated region
    $region22: #{tpu_custom_call.1} parent=1 // pred_check
      _
    $region23: #{tpu_custom_call.1} parent=1 // pred_check_branch
      %38 = sbr.rel (0) target = $region25
    $region24: #{tpu_custom_call.1} parent=1 // pred_region
      %40 = vsyncadd [#allocation6], 0
      %s42 = sshll.u32 %s5, 4
      %s43 = int_to_ptr.hbm [resolvable:$true] %s42
      %s44 = sshll.u32 [#allocation5], 4
      %s45 = int_to_ptr.vmem [resolvable:$true] %s44
      %47 = dma.hbm_to_vmem [thread:$0]  %s43, 16, %s45, [#allocation6]
    $region25: #{tpu_custom_call.1} parent=1 // pred_fallthru
      _
    // Predicated region
    $region26: #{tpu_custom_call.1} parent=1 // pred_check
      _
    $region27: #{tpu_custom_call.1} parent=1 // pred_check_branch
      %49 = sbr.rel (0) target = $region29
    $region28: #{tpu_custom_call.1} parent=1 // pred_region
      _
    $region29: #{tpu_custom_call.1} parent=1 // pred_fallthru
      _
    // Predicated region
    $region30: #{tpu_custom_call.1} parent=1 // pred_check
      _
    $region31: #{tpu_custom_call.1} parent=1 // pred_check_branch
      %51 = sbr.rel (0) target = $region33
    $region32: #{tpu_custom_call.1} parent=1 // pred_region
      _
    $region33: #{tpu_custom_call.1} parent=1 // pred_fallthru
      _
    // Predicated region
    $region34: #{tpu_custom_call.1} parent=1 // pred_check
      _
    $region35: #{tpu_custom_call.1} parent=1 // pred_check_branch
      %53 = sbr.rel (0) target = $region37
    $region36: #{tpu_custom_call.1} parent=1 // pred_region
      %55 = dma.done [#allocation3], 8192
    $region37: #{tpu_custom_call.1} parent=1 // pred_fallthru
      _
    // Predicated region
    $region38: #{tpu_custom_call.1} parent=1 // pred_check
      _
    $region39: #{tpu_custom_call.1} parent=1 // pred_check_branch
      %57 = sbr.rel (0) target = $region41
    $region40: #{tpu_custom_call.1} parent=1 // pred_region
      %59 = dma.done [#allocation6], 16
    $region41: #{tpu_custom_call.1} parent=1 // pred_fallthru
      _
    %v60 = vld [vmem:[%s0] sm:$0xff]
    %v61 = vld [vmem:[%s1] sm:$0xff]
    %vm62 = vcmp.eq.s32.totalorder %v61, 0
    %v63 = vsel %vm62, 1, 0
    %v64 = vcvt.s32.f32 %v63
    %v65 = vld [vmem:[%s2] sm:$0xff]
    %v66 = vld [vmem:[%s2 + $0x8] sm:$0xff]
    %v67 = vld [vmem:[%s3] sm:$0xf]
    %v69 = vperm.slane %v67, 0
    %v70 = vperm.slane %v67, 1
    %v71 = vperm.slane %v67, 2
    %v72 = vperm.slane %v67, 3
    %79 = vst [vmem:[#allocation1] ss:$2 sm:$0xff] %v65
    %s80 = scalar_lea.vmem [#allocation1], 16
    %81 = vst [vmem:[%s80] ss:$2 sm:$0xff] %v66
    %v82 = vld.sshfl [vmem:[#allocation1] sm:$0xff pattern:$0x75316420]
    %v83 = vld.sshfl [vmem:[#allocation1 + $0x8] sm:$0xff pattern:$0x75316420]
    %v84 = vld.sshfl [vmem:[#allocation1 + $0x10] sm:$0xff pattern:$0x75316420]
    %v85 = vld.sshfl [vmem:[#allocation1 + $0x18] sm:$0xff pattern:$0x75316420]
    %vm86 = vcmask 31744
    %v88 = vsel %vm86, %v60, 0
    %vm90 = vcmask 1043456
    %v91 = vsel %vm90, %v82, 0
    %v93 = vsel %vm90, %v83, 0
    %v95 = vsel %vm90, %v84, 0
    %v97 = vsel %vm90, %v85, 0
    %99 = vmatpush.msra.mxu0 0.0
    %100 = vmatpush.msra.mxu0 0.0
    %101 = vmatpush.msra.mxu0 0.0
    %102 = vmatpush.msra.mxu0 0.0
    %103 = vmatpush.msra.mxu0 0.0
    %104 = vmatpush.msra.mxu0 0.0
    %105 = vmatpush.msra.mxu0 0.0
    %106 = vmatpush.msra.mxu0 0.0
    %107 = vmatpush.msra.mxu0 0.0
    %108 = vmatpush.msra.mxu0 0.0
    %109 = vmatpush.msra.mxu0 0.0
    %110 = vmatpush.msra.mxu0 0.0
    %111 = vmatpush.msra.mxu0 0.0
    %112 = vmatpush.msra.mxu0 0.0
    %113 = vmatpush.msra.mxu0 0.0
    %114 = vmatpush.msra.mxu0 %v91
    %115 = vmatmul.f32.gmra.mxu0 %v88
    %v116 = vpop.f32.mrf.mxu0
    %v117 = vadd.f32 %v69, %v116
    %118 = vdwg.mxu0
    %119 = vmatpush.msra.mxu0 0.0
    %120 = vmatpush.msra.mxu0 0.0
    %121 = vmatpush.msra.mxu0 0.0
    %122 = vmatpush.msra.mxu0 0.0
    %123 = vmatpush.msra.mxu0 0.0
    %124 = vmatpush.msra.mxu0 0.0
    %125 = vmatpush.msra.mxu0 0.0
    %126 = vmatpush.msra.mxu0 0.0
    %127 = vmatpush.msra.mxu0 0.0
    %128 = vmatpush.msra.mxu0 0.0
    %129 = vmatpush.msra.mxu0 0.0
    %130 = vmatpush.msra.mxu0 0.0
    %131 = vmatpush.msra.mxu0 0.0
    %132 = vmatpush.msra.mxu0 0.0
    %133 = vmatpush.msra.mxu0 0.0
    %134 = vmatpush.msra.mxu0 %v93
    %135 = vmatmul.f32.gmra.mxu0 %v88
    %v136 = vpop.f32.mrf.mxu0
    %v137 = vadd.f32 %v70, %v136
    %138 = vdwg.mxu0
    %139 = vmatpush.msra.mxu0 0.0
    %140 = vmatpush.msra.mxu0 0.0
    %141 = vmatpush.msra.mxu0 0.0
    %142 = vmatpush.msra.mxu0 0.0
    %143 = vmatpush.msra.mxu0 0.0
    %144 = vmatpush.msra.mxu0 0.0
    %145 = vmatpush.msra.mxu0 0.0
    %146 = vmatpush.msra.mxu0 0.0
    %147 = vmatpush.msra.mxu0 0.0
    %148 = vmatpush.msra.mxu0 0.0
    %149 = vmatpush.msra.mxu0 0.0
    %150 = vmatpush.msra.mxu0 0.0
    %151 = vmatpush.msra.mxu0 0.0
    %152 = vmatpush.msra.mxu0 0.0
    %153 = vmatpush.msra.mxu0 0.0
    %154 = vmatpush.msra.mxu0 %v95
    %155 = vmatmul.f32.gmra.mxu0 %v88
    %v156 = vpop.f32.mrf.mxu0
    %v157 = vadd.f32 %v71, %v156
    %158 = vdwg.mxu0
    %159 = vmatpush.msra.mxu0 0.0
    %160 = vmatpush.msra.mxu0 0.0
    %161 = vmatpush.msra.mxu0 0.0
    %162 = vmatpush.msra.mxu0 0.0
    %163 = vmatpush.msra.mxu0 0.0
    %164 = vmatpush.msra.mxu0 0.0
    %165 = vmatpush.msra.mxu0 0.0
    %166 = vmatpush.msra.mxu0 0.0
    %167 = vmatpush.msra.mxu0 0.0
    %168 = vmatpush.msra.mxu0 0.0
    %169 = vmatpush.msra.mxu0 0.0
    %170 = vmatpush.msra.mxu0 0.0
    %171 = vmatpush.msra.mxu0 0.0
    %172 = vmatpush.msra.mxu0 0.0
    %173 = vmatpush.msra.mxu0 0.0
    %174 = vmatpush.msra.mxu0 %v97
    %175 = vmatmul.f32.gmra.mxu0 %v88
    %v176 = vpop.f32.mrf.mxu0
    %v177 = vadd.f32 %v72, %v176
    %178 = vdwg.mxu0
    %v179 = vmax.f32 %v117, 0.0
    %v180 = vmax.f32 %v137, 0.0
    %v181 = vmax.f32 %v157, 0.0
    %v182 = vmax.f32 %v177, 0.0
    %v183 = vld [vmem:[#allocation2] sm:$0xff]
    %v184 = vld [vmem:[#allocation2 + $0x8] sm:$0xff]
    %v185 = vld [vmem:[#allocation2 + $0x10] sm:$0xff]
    %v186 = vld [vmem:[#allocation2 + $0x18] sm:$0xff]
    %v187 = vld [vmem:[#allocation2 + $0x20] sm:$0xff]
    %v188 = vld [vmem:[#allocation2 + $0x28] sm:$0xff]
    %v189 = vld [vmem:[#allocation2 + $0x30] sm:$0xff]
    %v190 = vld [vmem:[#allocation2 + $0x38] sm:$0xff]
    %v191 = vld [vmem:[#allocation2 + $0x40] sm:$0xff]
    %v192 = vld [vmem:[#allocation2 + $0x48] sm:$0xff]
    %v193 = vld [vmem:[#allocation2 + $0x50] sm:$0xff]
    %v194 = vld [vmem:[#allocation2 + $0x58] sm:$0xff]
    %v195 = vld [vmem:[#allocation2 + $0x60] sm:$0xff]
    %v196 = vld [vmem:[#allocation2 + $0x68] sm:$0xff]
    %v197 = vld [vmem:[#allocation2 + $0x70] sm:$0xff]
    %v198 = vld [vmem:[#allocation2 + $0x78] sm:$0xff]
    %v199 = vld [vmem:[#allocation2 + $0x80] sm:$0xff]
    %v200 = vld [vmem:[#allocation2 + $0x88] sm:$0xff]
    %v201 = vld [vmem:[#allocation2 + $0x90] sm:$0xff]
    %v202 = vld [vmem:[#allocation2 + $0x98] sm:$0xff]
    %v203 = vld [vmem:[#allocation2 + $0xa0] sm:$0xff]
    %v204 = vld [vmem:[#allocation2 + $0xa8] sm:$0xff]
    %v205 = vld [vmem:[#allocation2 + $0xb0] sm:$0xff]
    %v206 = vld [vmem:[#allocation2 + $0xb8] sm:$0xff]
    %v207 = vld [vmem:[#allocation2 + $0xc0] sm:$0xff]
    %v208 = vld [vmem:[#allocation2 + $0xc8] sm:$0xff]
    %v209 = vld [vmem:[#allocation2 + $0xd0] sm:$0xff]
    %v210 = vld [vmem:[#allocation2 + $0xd8] sm:$0xff]
    %v211 = vld [vmem:[#allocation2 + $0xe0] sm:$0xff]
    %v212 = vld [vmem:[#allocation2 + $0xe8] sm:$0xff]
    %v213 = vld [vmem:[#allocation2 + $0xf0] sm:$0xff]
    %v214 = vld [vmem:[#allocation2 + $0xf8] sm:$0xff]
    %v215 = vld [vmem:[#allocation2 + $0x100] sm:$0xff]
    %v216 = vld [vmem:[#allocation2 + $0x108] sm:$0xff]
    %v217 = vld [vmem:[#allocation2 + $0x110] sm:$0xff]
    %v218 = vld [vmem:[#allocation2 + $0x118] sm:$0xff]
    %v219 = vld [vmem:[#allocation2 + $0x120] sm:$0xff]
    %v220 = vld [vmem:[#allocation2 + $0x128] sm:$0xff]
    %v221 = vld [vmem:[#allocation2 + $0x130] sm:$0xff]
    %v222 = vld [vmem:[#allocation2 + $0x138] sm:$0xff]
    %v223 = vld [vmem:[#allocation2 + $0x140] sm:$0xff]
    %v224 = vld [vmem:[#allocation2 + $0x148] sm:$0xff]
    %v225 = vld [vmem:[#allocation2 + $0x150] sm:$0xff]
    %v226 = vld [vmem:[#allocation2 + $0x158] sm:$0xff]
    %v227 = vld [vmem:[#allocation2 + $0x160] sm:$0xff]
    %v228 = vld [vmem:[#allocation2 + $0x168] sm:$0xff]
    %v229 = vld [vmem:[#allocation2 + $0x170] sm:$0xff]
    %v230 = vld [vmem:[#allocation2 + $0x178] sm:$0xff]
    %v231 = vld [vmem:[#allocation2 + $0x180] sm:$0xff]
    %v232 = vld [vmem:[#allocation2 + $0x188] sm:$0xff]
    %v233 = vld [vmem:[#allocation2 + $0x190] sm:$0xff]
    %v234 = vld [vmem:[#allocation2 + $0x198] sm:$0xff]
    %v235 = vld [vmem:[#allocation2 + $0x1a0] sm:$0xff]
    %v236 = vld [vmem:[#allocation2 + $0x1a8] sm:$0xff]
    %v237 = vld [vmem:[#allocation2 + $0x1b0] sm:$0xff]
    %v238 = vld [vmem:[#allocation2 + $0x1b8] sm:$0xff]
    %v239 = vld [vmem:[#allocation2 + $0x1c0] sm:$0xff]
    %v240 = vld [vmem:[#allocation2 + $0x1c8] sm:$0xff]
    %v241 = vld [vmem:[#allocation2 + $0x1d0] sm:$0xff]
    %v242 = vld [vmem:[#allocation2 + $0x1d8] sm:$0xff]
    %v243 = vld [vmem:[#allocation2 + $0x1e0] sm:$0xff]
    %v244 = vld [vmem:[#allocation2 + $0x1e8] sm:$0xff]
    %v245 = vld [vmem:[#allocation2 + $0x1f0] sm:$0xff]
    %v246 = vld [vmem:[#allocation2 + $0x1f8] sm:$0xff]
    %v247 = vld [vmem:[#allocation5] sm:$0x1]
    %v249 = vperm.slane %v247, 0
    %251 = vmatpush.msra.mxu0 %v198
    %252 = vmatpush.msra.mxu0 %v197
    %253 = vmatpush.msra.mxu0 %v196
    %254 = vmatpush.msra.mxu0 %v195
    %255 = vmatpush.msra.mxu0 %v194
    %256 = vmatpush.msra.mxu0 %v193
    %257 = vmatpush.msra.mxu0 %v192
    %258 = vmatpush.msra.mxu0 %v191
    %259 = vmatpush.msra.mxu0 %v190
    %260 = vmatpush.msra.mxu0 %v189
    %261 = vmatpush.msra.mxu0 %v188
    %262 = vmatpush.msra.mxu0 %v187
    %263 = vmatpush.msra.mxu0 %v186
    %264 = vmatpush.msra.mxu0 %v185
    %265 = vmatpush.msra.mxu0 %v184
    %266 = vmatpush.msra.mxu0 %v183
    %267 = vmatmul.f32.gmra.mxu0 %v179
    %v268 = vpop.f32.mrf.mxu0
    %v269 = vadd.f32 %v249, %v268
    %270 = vdwg.mxu0
    %271 = vmatpush.msra.mxu0 %v214
    %272 = vmatpush.msra.mxu0 %v213
    %273 = vmatpush.msra.mxu0 %v212
    %274 = vmatpush.msra.mxu0 %v211
    %275 = vmatpush.msra.mxu0 %v210
    %276 = vmatpush.msra.mxu0 %v209
    %277 = vmatpush.msra.mxu0 %v208
    %278 = vmatpush.msra.mxu0 %v207
    %279 = vmatpush.msra.mxu0 %v206
    %280 = vmatpush.msra.mxu0 %v205
    %281 = vmatpush.msra.mxu0 %v204
    %282 = vmatpush.msra.mxu0 %v203
    %283 = vmatpush.msra.mxu0 %v202
    %284 = vmatpush.msra.mxu0 %v201
    %285 = vmatpush.msra.mxu0 %v200
    %286 = vmatpush.msra.mxu0 %v199
    %287 = vmatmul.f32.gmra.mxu0 %v180
    %v288 = vpop.f32.mrf.mxu0
    %v289 = vadd.f32 %v269, %v288
    %290 = vdwg.mxu0
    %291 = vmatpush.msra.mxu0 %v230
    %292 = vmatpush.msra.mxu0 %v229
    %293 = vmatpush.msra.mxu0 %v228
    %294 = vmatpush.msra.mxu0 %v227
    %295 = vmatpush.msra.mxu0 %v226
    %296 = vmatpush.msra.mxu0 %v225
    %297 = vmatpush.msra.mxu0 %v224
    %298 = vmatpush.msra.mxu0 %v223
    %299 = vmatpush.msra.mxu0 %v222
    %300 = vmatpush.msra.mxu0 %v221
    %301 = vmatpush.msra.mxu0 %v220
    %302 = vmatpush.msra.mxu0 %v219
    %303 = vmatpush.msra.mxu0 %v218
    %304 = vmatpush.msra.mxu0 %v217
    %305 = vmatpush.msra.mxu0 %v216
    %306 = vmatpush.msra.mxu0 %v215
    %307 = vmatmul.f32.gmra.mxu0 %v181
    %v308 = vpop.f32.mrf.mxu0
    %v309 = vadd.f32 %v289, %v308
    %310 = vdwg.mxu0
    %311 = vmatpush.msra.mxu0 %v246
    %312 = vmatpush.msra.mxu0 %v245
    %313 = vmatpush.msra.mxu0 %v244
    %314 = vmatpush.msra.mxu0 %v243
    %315 = vmatpush.msra.mxu0 %v242
    %316 = vmatpush.msra.mxu0 %v241
    %317 = vmatpush.msra.mxu0 %v240
    %318 = vmatpush.msra.mxu0 %v239
    %319 = vmatpush.msra.mxu0 %v238
    %320 = vmatpush.msra.mxu0 %v237
    %321 = vmatpush.msra.mxu0 %v236
    %322 = vmatpush.msra.mxu0 %v235
    %323 = vmatpush.msra.mxu0 %v234
    %324 = vmatpush.msra.mxu0 %v233
    %325 = vmatpush.msra.mxu0 %v232
    %326 = vmatpush.msra.mxu0 %v231
    %327 = vmatmul.f32.gmra.mxu0 %v182
    %v328 = vpop.f32.mrf.mxu0
    %v329 = vadd.f32 %v309, %v328
    %330 = vdwg.mxu0
    %v331 = vld [vmem:[%s6] sm:$0xf]
    %v333 = vsel %vm86, %v64, 0
    %v336 = vsel %vm90, %v331, 0
    %338 = vmatpush.msra.mxu0 0.0
    %339 = vmatpush.msra.mxu0 0.0
    %340 = vmatpush.msra.mxu0 0.0
    %341 = vmatpush.msra.mxu0 0.0
    %342 = vmatpush.msra.mxu0 0.0
    %343 = vmatpush.msra.mxu0 0.0
    %344 = vmatpush.msra.mxu0 0.0
    %345 = vmatpush.msra.mxu0 0.0
    %346 = vmatpush.msra.mxu0 0.0
    %347 = vmatpush.msra.mxu0 0.0
    %348 = vmatpush.msra.mxu0 0.0
    %349 = vmatpush.msra.mxu0 0.0
    %350 = vmatpush.msra.mxu0 0.0
    %351 = vmatpush.msra.mxu0 0.0
    %352 = vmatpush.msra.mxu0 0.0
    %353 = vmatpush.msra.mxu0 %v336
    %354 = vmatmul.f32.gmra.mxu0 %v333
    %v355 = vpop.f32.mrf.mxu0
    %v356 = vadd.f32 0.0, %v355
    %357 = vdwg.mxu0
    %vm358 = vcmp.gt.f32.partialorder %v356, 0.5
    %v359 = vld [vmem:[%s7] sm:$0x1]
    %v361 = vperm.slane %v359, 0
    %v363 = vsel %vm358, %v361, %v329
    %364 = vst [vmem:[#allocation7] sm:$0xff] %v363
    // Predicated region
    $region42: #{tpu_custom_call.1} parent=1 // pred_check
      _
    $region43: #{tpu_custom_call.1} parent=1 // pred_check_branch
      %366 = sbr.rel (0) target = $region45
    $region44: #{tpu_custom_call.1} parent=1 // pred_region
      %368 = vsyncadd [#allocation4], 0
      %s370 = sshll.u32 [#allocation7], 4
      %s371 = int_to_ptr.vmem [resolvable:$true] %s370
      %s372 = sshll.u32 %s8, 4
      %s373 = int_to_ptr.hbm [resolvable:$true] %s372
      %375 = dma.vmem_to_hbm [thread:$0]  %s371, 128, %s373, [#allocation4]
    $region45: #{tpu_custom_call.1} parent=1 // pred_fallthru
      _
    // Predicated region
    $region46: #{tpu_custom_call.1} parent=1 // pred_check
      _
    $region47: #{tpu_custom_call.1} parent=1 // pred_check_branch
      %377 = sbr.rel (0) target = $region49
    $region48: #{tpu_custom_call.1} parent=1 // pred_region
      %379 = dma.done [#allocation4], 128
    $region49: #{tpu_custom_call.1} parent=1 // pred_fallthru
      _
    %380 = vsyncpa [#allocation3], 1
    %381 = vsyncpa [#allocation6], 1
    %382 = vsyncpa [#allocation4], 1

</llo_original>
